<compile_context>
chip_gen: v7x
topology: tpu7x:2x2x1
jax: 0.10.0
libtpu: 0.0.40
codegen_flags: <defaults>
</compile_context>

<pallas_src>
import functools
import math

import jax
import jax.numpy as jnp
from jax.experimental import pallas as pl
from jax.experimental.pallas import tpu as pltpu


def _fused_mlp_kernel(*refs, acts, has_ln: bool, eps: float = 1e-5):
    """Fused MLP: y = L_n(...L_1(x)...) where L_i = act(LN(x @ w_i + b_i)).

    refs layout: (x_ref, w1, b1, g1, be1, w2, b2, g2, be2, ..., o_ref)
    All intermediates live in vregs/VMEM; only x is read from and the final
    activation written to HBM.
    """
    x_ref = refs[0]
    o_ref = refs[-1]
    param_refs = refs[1:-1]

    y = x_ref[...]  # already f32; no redundant cast
    for n, apply_act in enumerate(acts):
        w_ref, b_ref, g_ref, be_ref = param_refs[4 * n: 4 * n + 4]
        # MXU matmul with f32 accumulation, bias broadcast over rows.
        y = jnp.dot(y, w_ref[...], preferred_element_type=jnp.float32)
        y = y + b_ref[...]
        if has_ln:
            mean = jnp.mean(y, axis=-1, keepdims=True)
            centered = y - mean
            var = jnp.mean(centered * centered, axis=-1, keepdims=True)
            y = centered * jax.lax.rsqrt(var + eps)
            y = y * g_ref[...] + be_ref[...]
        if apply_act:
            y = jnp.maximum(y, 0.0)  # ReLU
    o_ref[...] = y.astype(o_ref.dtype)


def mlp_fused(x, layers, *, has_ln: bool, batch_tile: int | None = None):
    """Run the whole MLP as one pallas_call, tiled (only) over batch."""
    B, IN = x.shape
    OUT = layers[-1][0].shape[1]

    # Single grid step for small batches; ~256-row tiles once batch scales.
    if batch_tile is None:
        batch_tile = B if B <= 256 else 256
    n_tiles = pl.cdiv(B, batch_tile)
    Bp = n_tiles * batch_tile
    if Bp != B:
        # Ragged final tile: pad rows (discarded after the call).
        x = jnp.pad(x, ((0, Bp - B), (0, 0)))

    acts = tuple(bool(l[4]) for l in layers)
    kernel = functools.partial(_fused_mlp_kernel, acts=acts, has_ln=has_ln)

    in_specs = [pl.BlockSpec((batch_tile, IN), lambda i: (i, 0))]  # x tile
    params = []
    for (w, b, g, be, _) in layers:
        for p in (w, b, g, be):
            params.append(p)
            # Full (tiny) parameter arrays resident in VMEM every step.
            in_specs.append(pl.BlockSpec(p.shape, lambda i: (0, 0)))

    flops = sum(2 * Bp * w.shape[0] * w.shape[1] for (w, _, _, _, _) in layers)
    bytes_accessed = (x.size * x.dtype.itemsize
                      + Bp * OUT * x.dtype.itemsize
                      + sum(p.size * p.dtype.itemsize for p in params))
    transcendentals = Bp * len(layers) if has_ln else 0  # rsqrt per row/layer

    out = pl.pallas_call(
        kernel,
        out_shape=jax.ShapeDtypeStruct((Bp, OUT), x.dtype),
        grid=(n_tiles,),
        in_specs=in_specs,
        out_specs=pl.BlockSpec((batch_tile, OUT), lambda i: (i, 0)),
        compiler_params=pltpu.CompilerParams(
            dimension_semantics=("parallel",)),  # v7x: shard batch across TCs
        cost_estimate=pl.CostEstimate(
            flops=flops,
            transcendentals=transcendentals,
            bytes_accessed=bytes_accessed),
    )(x, *params)

    return out[:B] if Bp != B else out


class MLPPallas:
    """JAX/Pallas mirror of the PyTorch MLP module (eval mode)."""

    def __init__(self, key, input_dim, output_dim, layers_num,
                 hidden_dim=None, has_ln=False, use_act_out=False):
        assert layers_num >= 1
        self.has_ln = has_ln
        self.layers = []  # list of (w, b, gamma, beta, apply_act)
        for n in range(layers_num):
            if n == 0:
                in_d = input_dim
                out_d = output_dim if layers_num == 1 else hidden_dim
                act = use_act_out if layers_num == 1 else True
            elif n == layers_num - 1:
                in_d, out_d, act = hidden_dim, output_dim, use_act_out
            else:
                in_d, out_d, act = hidden_dim, hidden_dim, True

            key, kw, kb = jax.random.split(key, 3)
            bound = 1.0 / math.sqrt(in_d)
            # PyTorch nn.Linear default init: U(-1/sqrt(in), 1/sqrt(in)),
            # stored as [in, out] (transpose of torch's [out, in]).
            # Kept in f32: at these sizes DMA is negligible and f32 keeps the
            # numerics bit-comparable across v5e/v6e/v7x (bf16 weights only
            # pay off once dims/batch scale).
            w = jax.random.uniform(kw, (in_d, out_d), jnp.float32,
                                   minval=-bound, maxval=bound)
            b = jax.random.uniform(kb, (1, out_d), jnp.float32,
                                   minval=-bound, maxval=bound)
            gamma = jnp.ones((1, out_d), jnp.float32)   # LayerNorm default
            beta = jnp.zeros((1, out_d), jnp.float32)
            self.layers.append((w, b, gamma, beta, act))

    def __call__(self, x):
        # Whole MLP in one fused pallas_call; no HBM round-trips between
        # layers, no per-layer launch overhead.
        return mlp_fused(x, self.layers, has_ln=self.has_ln)


if __name__ == "__main__":
    key = jax.random.PRNGKey(0)
    key, kx, kp = jax.random.split(key, 3)

    batch = 16
    input_dim, hidden_dim, output_dim = 16, 32, 8
    layers_num = 3

    x = jax.random.normal(kx, (batch, input_dim), jnp.float32)

    mlp = MLPPallas(kp, input_dim=input_dim, output_dim=output_dim,
                    layers_num=layers_num, hidden_dim=hidden_dim,
                    has_ln=True, use_act_out=False)

    out = mlp(x)
    out = jax.block_until_ready(out)
    assert out.shape == (batch, output_dim)

    # Pure-JAX reference check of the fused kernel semantics.
    def ref(x):
        y = x
        for (w, b, g, be, act) in mlp.layers:
            y = y @ w + b
            m = y.mean(-1, keepdims=True)
            v = ((y - m) ** 2).mean(-1, keepdims=True)
            y = (y - m) * jax.lax.rsqrt(v + 1e-5) * g + be
            if act:
                y = jnp.maximum(y, 0.0)
        return y

    assert jnp.allclose(out, ref(x), atol=1e-5, rtol=1e-5)
    print("KERNEL_OK")
</pallas_src>

<mosaic_0001>
module attributes {stable_mosaic.version = 11 : i64} {
  func.func @_fused_mlp_kernel(%arg0: i32, %arg1: memref<16x16xf32, #tpu.memory_space<vmem>>, %arg2: memref<16x32xf32, #tpu.memory_space<vmem>>, %arg3: memref<1x32xf32, #tpu.memory_space<vmem>>, %arg4: memref<1x32xf32, #tpu.memory_space<vmem>>, %arg5: memref<1x32xf32, #tpu.memory_space<vmem>>, %arg6: memref<32x32xf32, #tpu.memory_space<vmem>>, %arg7: memref<1x32xf32, #tpu.memory_space<vmem>>, %arg8: memref<1x32xf32, #tpu.memory_space<vmem>>, %arg9: memref<1x32xf32, #tpu.memory_space<vmem>>, %arg10: memref<32x8xf32, #tpu.memory_space<vmem>>, %arg11: memref<1x8xf32, #tpu.memory_space<vmem>>, %arg12: memref<1x8xf32, #tpu.memory_space<vmem>>, %arg13: memref<1x8xf32, #tpu.memory_space<vmem>>, %arg14: memref<16x8xf32, #tpu.memory_space<vmem>>) attributes {dimension_semantics = [#tpu.dimension_semantics<parallel>], iteration_bounds = array<i64: 1>, scalar_prefetch = 0 : i64, scratch_operands = 0 : i64, tpu.core_type = #tpu.core_type<tc>, window_params = [{transform_indices = @transform_0, window_bounds = array<i64: 16, 16>}, {pipeline_mode = #tpu.pipeline_mode<synchronous>, transform_indices = @transform_1, window_bounds = array<i64: 16, 32>}, {pipeline_mode = #tpu.pipeline_mode<synchronous>, transform_indices = @transform_2, window_bounds = array<i64: 1, 32>}, {pipeline_mode = #tpu.pipeline_mode<synchronous>, transform_indices = @transform_3, window_bounds = array<i64: 1, 32>}, {pipeline_mode = #tpu.pipeline_mode<synchronous>, transform_indices = @transform_4, window_bounds = array<i64: 1, 32>}, {pipeline_mode = #tpu.pipeline_mode<synchronous>, transform_indices = @transform_5, window_bounds = array<i64: 32, 32>}, {pipeline_mode = #tpu.pipeline_mode<synchronous>, transform_indices = @transform_6, window_bounds = array<i64: 1, 32>}, {pipeline_mode = #tpu.pipeline_mode<synchronous>, transform_indices = @transform_7, window_bounds = array<i64: 1, 32>}, {pipeline_mode = #tpu.pipeline_mode<synchronous>, transform_indices = @transform_8, window_bounds = array<i64: 1, 32>}, {pipeline_mode = #tpu.pipeline_mode<synchronous>, transform_indices = @transform_9, window_bounds = array<i64: 32, 8>}, {pipeline_mode = #tpu.pipeline_mode<synchronous>, transform_indices = @transform_10, window_bounds = array<i64: 1, 8>}, {pipeline_mode = #tpu.pipeline_mode<synchronous>, transform_indices = @transform_11, window_bounds = array<i64: 1, 8>}, {pipeline_mode = #tpu.pipeline_mode<synchronous>, transform_indices = @transform_12, window_bounds = array<i64: 1, 8>}, {transform_indices = @transform_13, window_bounds = array<i64: 16, 8>}]} {
    %c0 = arith.constant 0 : index
    %c0_0 = arith.constant 0 : index
    %0 = vector.load %arg1[%c0, %c0_0] : memref<16x16xf32, #tpu.memory_space<vmem>>, vector<16x16xf32>
    %c0_1 = arith.constant 0 : index
    %c0_2 = arith.constant 0 : index
    %1 = vector.load %arg2[%c0_1, %c0_2] : memref<16x32xf32, #tpu.memory_space<vmem>>, vector<16x32xf32>
    %cst = arith.constant dense<0.000000e+00> : vector<16x32xf32>
    %2 = tpu.matmul %0, %1, %cst {dimension_numbers = #tpu.dot_dimension_numbers<[1], [0], [0], [1], [0, 0, 1, 1], [], []>} : vector<16x16xf32>, vector<16x32xf32>, vector<16x32xf32> -> vector<16x32xf32>
    %c0_3 = arith.constant 0 : index
    %c0_4 = arith.constant 0 : index
    %3 = vector.load %arg3[%c0_3, %c0_4] : memref<1x32xf32, #tpu.memory_space<vmem>>, vector<1x32xf32>
    %4 = vector.broadcast %3 : vector<1x32xf32> to vector<16x32xf32>
    %5 = arith.addf %2, %4 : vector<16x32xf32>
    %cst_5 = arith.constant dense<0.000000e+00> : vector<16xf32>
    %6 = vector.multi_reduction <add>, %5, %cst_5 [1] : vector<16x32xf32> to vector<16xf32>
    %7 = vector.shape_cast %6 : vector<16xf32> to vector<16x1xf32>
    %cst_6 = arith.constant 3.200000e+01 : f32
    %8 = vector.broadcast %cst_6 : f32 to vector<16x1xf32>
    %9 = arith.divf %7, %8 : vector<16x1xf32>
    %10 = vector.broadcast %9 : vector<16x1xf32> to vector<16x32xf32>
    %11 = arith.subf %5, %10 : vector<16x32xf32>
    %12 = arith.mulf %11, %11 : vector<16x32xf32>
    %cst_7 = arith.constant dense<0.000000e+00> : vector<16xf32>
    %13 = vector.multi_reduction <add>, %12, %cst_7 [1] : vector<16x32xf32> to vector<16xf32>
    %14 = vector.shape_cast %13 : vector<16xf32> to vector<16x1xf32>
    %cst_8 = arith.constant 3.200000e+01 : f32
    %15 = vector.broadcast %cst_8 : f32 to vector<16x1xf32>
    %16 = arith.divf %14, %15 : vector<16x1xf32>
    %cst_9 = arith.constant 9.99999974E-6 : f32
    %17 = vector.broadcast %cst_9 : f32 to vector<16x1xf32>
    %18 = arith.addf %16, %17 : vector<16x1xf32>
    %19 = math.rsqrt %18 : vector<16x1xf32>
    %20 = vector.broadcast %19 : vector<16x1xf32> to vector<16x32xf32>
    %21 = arith.mulf %11, %20 : vector<16x32xf32>
    %c0_10 = arith.constant 0 : index
    %c0_11 = arith.constant 0 : index
    %22 = vector.load %arg4[%c0_10, %c0_11] : memref<1x32xf32, #tpu.memory_space<vmem>>, vector<1x32xf32>
    %23 = vector.broadcast %22 : vector<1x32xf32> to vector<16x32xf32>
    %24 = arith.mulf %21, %23 : vector<16x32xf32>
    %c0_12 = arith.constant 0 : index
    %c0_13 = arith.constant 0 : index
    %25 = vector.load %arg5[%c0_12, %c0_13] : memref<1x32xf32, #tpu.memory_space<vmem>>, vector<1x32xf32>
    %26 = vector.broadcast %25 : vector<1x32xf32> to vector<16x32xf32>
    %27 = arith.addf %24, %26 : vector<16x32xf32>
    %cst_14 = arith.constant 0.000000e+00 : f32
    %28 = vector.broadcast %cst_14 : f32 to vector<16x32xf32>
    %29 = arith.maximumf %27, %28 : vector<16x32xf32>
    %c0_15 = arith.constant 0 : index
    %c0_16 = arith.constant 0 : index
    %30 = vector.load %arg6[%c0_15, %c0_16] : memref<32x32xf32, #tpu.memory_space<vmem>>, vector<32x32xf32>
    %cst_17 = arith.constant dense<0.000000e+00> : vector<16x32xf32>
    %31 = tpu.matmul %29, %30, %cst_17 {dimension_numbers = #tpu.dot_dimension_numbers<[1], [0], [0], [1], [0, 0, 1, 1], [], []>} : vector<16x32xf32>, vector<32x32xf32>, vector<16x32xf32> -> vector<16x32xf32>
    %c0_18 = arith.constant 0 : index
    %c0_19 = arith.constant 0 : index
    %32 = vector.load %arg7[%c0_18, %c0_19] : memref<1x32xf32, #tpu.memory_space<vmem>>, vector<1x32xf32>
    %33 = vector.broadcast %32 : vector<1x32xf32> to vector<16x32xf32>
    %34 = arith.addf %31, %33 : vector<16x32xf32>
    %cst_20 = arith.constant dense<0.000000e+00> : vector<16xf32>
    %35 = vector.multi_reduction <add>, %34, %cst_20 [1] : vector<16x32xf32> to vector<16xf32>
    %36 = vector.shape_cast %35 : vector<16xf32> to vector<16x1xf32>
    %cst_21 = arith.constant 3.200000e+01 : f32
    %37 = vector.broadcast %cst_21 : f32 to vector<16x1xf32>
    %38 = arith.divf %36, %37 : vector<16x1xf32>
    %39 = vector.broadcast %38 : vector<16x1xf32> to vector<16x32xf32>
    %40 = arith.subf %34, %39 : vector<16x32xf32>
    %41 = arith.mulf %40, %40 : vector<16x32xf32>
    %cst_22 = arith.constant dense<0.000000e+00> : vector<16xf32>
    %42 = vector.multi_reduction <add>, %41, %cst_22 [1] : vector<16x32xf32> to vector<16xf32>
    %43 = vector.shape_cast %42 : vector<16xf32> to vector<16x1xf32>
    %cst_23 = arith.constant 3.200000e+01 : f32
    %44 = vector.broadcast %cst_23 : f32 to vector<16x1xf32>
    %45 = arith.divf %43, %44 : vector<16x1xf32>
    %cst_24 = arith.constant 9.99999974E-6 : f32
    %46 = vector.broadcast %cst_24 : f32 to vector<16x1xf32>
    %47 = arith.addf %45, %46 : vector<16x1xf32>
    %48 = math.rsqrt %47 : vector<16x1xf32>
    %49 = vector.broadcast %48 : vector<16x1xf32> to vector<16x32xf32>
    %50 = arith.mulf %40, %49 : vector<16x32xf32>
    %c0_25 = arith.constant 0 : index
    %c0_26 = arith.constant 0 : index
    %51 = vector.load %arg8[%c0_25, %c0_26] : memref<1x32xf32, #tpu.memory_space<vmem>>, vector<1x32xf32>
    %52 = vector.broadcast %51 : vector<1x32xf32> to vector<16x32xf32>
    %53 = arith.mulf %50, %52 : vector<16x32xf32>
    %c0_27 = arith.constant 0 : index
    %c0_28 = arith.constant 0 : index
    %54 = vector.load %arg9[%c0_27, %c0_28] : memref<1x32xf32, #tpu.memory_space<vmem>>, vector<1x32xf32>
    %55 = vector.broadcast %54 : vector<1x32xf32> to vector<16x32xf32>
    %56 = arith.addf %53, %55 : vector<16x32xf32>
    %cst_29 = arith.constant 0.000000e+00 : f32
    %57 = vector.broadcast %cst_29 : f32 to vector<16x32xf32>
    %58 = arith.maximumf %56, %57 : vector<16x32xf32>
    %c0_30 = arith.constant 0 : index
    %c0_31 = arith.constant 0 : index
    %59 = vector.load %arg10[%c0_30, %c0_31] : memref<32x8xf32, #tpu.memory_space<vmem>>, vector<32x8xf32>
    %cst_32 = arith.constant dense<0.000000e+00> : vector<16x8xf32>
    %60 = tpu.matmul %58, %59, %cst_32 {dimension_numbers = #tpu.dot_dimension_numbers<[1], [0], [0], [1], [0, 0, 1, 1], [], []>} : vector<16x32xf32>, vector<32x8xf32>, vector<16x8xf32> -> vector<16x8xf32>
    %c0_33 = arith.constant 0 : index
    %c0_34 = arith.constant 0 : index
    %61 = vector.load %arg11[%c0_33, %c0_34] : memref<1x8xf32, #tpu.memory_space<vmem>>, vector<1x8xf32>
    %62 = vector.broadcast %61 : vector<1x8xf32> to vector<16x8xf32>
    %63 = arith.addf %60, %62 : vector<16x8xf32>
    %cst_35 = arith.constant dense<0.000000e+00> : vector<16xf32>
    %64 = vector.multi_reduction <add>, %63, %cst_35 [1] : vector<16x8xf32> to vector<16xf32>
    %65 = vector.shape_cast %64 : vector<16xf32> to vector<16x1xf32>
    %cst_36 = arith.constant 8.000000e+00 : f32
    %66 = vector.broadcast %cst_36 : f32 to vector<16x1xf32>
    %67 = arith.divf %65, %66 : vector<16x1xf32>
    %68 = vector.broadcast %67 : vector<16x1xf32> to vector<16x8xf32>
    %69 = arith.subf %63, %68 : vector<16x8xf32>
    %70 = arith.mulf %69, %69 : vector<16x8xf32>
    %cst_37 = arith.constant dense<0.000000e+00> : vector<16xf32>
    %71 = vector.multi_reduction <add>, %70, %cst_37 [1] : vector<16x8xf32> to vector<16xf32>
    %72 = vector.shape_cast %71 : vector<16xf32> to vector<16x1xf32>
    %cst_38 = arith.constant 8.000000e+00 : f32
    %73 = vector.broadcast %cst_38 : f32 to vector<16x1xf32>
    %74 = arith.divf %72, %73 : vector<16x1xf32>
    %cst_39 = arith.constant 9.99999974E-6 : f32
    %75 = vector.broadcast %cst_39 : f32 to vector<16x1xf32>
    %76 = arith.addf %74, %75 : vector<16x1xf32>
    %77 = math.rsqrt %76 : vector<16x1xf32>
    %78 = vector.broadcast %77 : vector<16x1xf32> to vector<16x8xf32>
    %79 = arith.mulf %69, %78 : vector<16x8xf32>
    %c0_40 = arith.constant 0 : index
    %c0_41 = arith.constant 0 : index
    %80 = vector.load %arg12[%c0_40, %c0_41] : memref<1x8xf32, #tpu.memory_space<vmem>>, vector<1x8xf32>
    %81 = vector.broadcast %80 : vector<1x8xf32> to vector<16x8xf32>
    %82 = arith.mulf %79, %81 : vector<16x8xf32>
    %c0_42 = arith.constant 0 : index
    %c0_43 = arith.constant 0 : index
    %83 = vector.load %arg13[%c0_42, %c0_43] : memref<1x8xf32, #tpu.memory_space<vmem>>, vector<1x8xf32>
    %84 = vector.broadcast %83 : vector<1x8xf32> to vector<16x8xf32>
    %85 = arith.addf %82, %84 : vector<16x8xf32>
    %c0_44 = arith.constant 0 : index
    %c0_45 = arith.constant 0 : index
    %86 = vector.load %arg14[%c0_44, %c0_45] : memref<16x8xf32, #tpu.memory_space<vmem>>, vector<16x8xf32>
    tpu.vector_store %arg14[%c0_44, %c0_45], %85 {strides = array<i32>} : memref<16x8xf32, #tpu.memory_space<vmem>>, vector<16x8xf32>,
    return
  }
  func.func @transform_0(%arg0: i32) -> (i32, i32) {
    %c0_i32 = arith.constant 0 : i32
    %c0_i32_0 = arith.constant 0 : i32
    return %arg0, %c0_i32 : i32, i32
  }
  func.func @transform_1(%arg0: i32) -> (i32, i32) {
    %c0_i32 = arith.constant 0 : i32
    %c0_i32_0 = arith.constant 0 : i32
    %c0_i32_1 = arith.constant 0 : i32
    return %c0_i32, %c0_i32_0 : i32, i32
  }
  func.func @transform_2(%arg0: i32) -> (i32, i32) {
    %c0_i32 = arith.constant 0 : i32
    %c0_i32_0 = arith.constant 0 : i32
    %c0_i32_1 = arith.constant 0 : i32
    return %c0_i32, %c0_i32_0 : i32, i32
  }
  func.func @transform_3(%arg0: i32) -> (i32, i32) {
    %c0_i32 = arith.constant 0 : i32
    %c0_i32_0 = arith.constant 0 : i32
    %c0_i32_1 = arith.constant 0 : i32
    return %c0_i32, %c0_i32_0 : i32, i32
  }
  func.func @transform_4(%arg0: i32) -> (i32, i32) {
    %c0_i32 = arith.constant 0 : i32
    %c0_i32_0 = arith.constant 0 : i32
    %c0_i32_1 = arith.constant 0 : i32
    return %c0_i32, %c0_i32_0 : i32, i32
  }
  func.func @transform_5(%arg0: i32) -> (i32, i32) {
    %c0_i32 = arith.constant 0 : i32
    %c0_i32_0 = arith.constant 0 : i32
    %c0_i32_1 = arith.constant 0 : i32
    return %c0_i32, %c0_i32_0 : i32, i32
  }
  func.func @transform_6(%arg0: i32) -> (i32, i32) {
    %c0_i32 = arith.constant 0 : i32
    %c0_i32_0 = arith.constant 0 : i32
    %c0_i32_1 = arith.constant 0 : i32
    return %c0_i32, %c0_i32_0 : i32, i32
  }
  func.func @transform_7(%arg0: i32) -> (i32, i32) {
    %c0_i32 = arith.constant 0 : i32
    %c0_i32_0 = arith.constant 0 : i32
    %c0_i32_1 = arith.constant 0 : i32
    return %c0_i32, %c0_i32_0 : i32, i32
  }
  func.func @transform_8(%arg0: i32) -> (i32, i32) {
    %c0_i32 = arith.constant 0 : i32
    %c0_i32_0 = arith.constant 0 : i32
    %c0_i32_1 = arith.constant 0 : i32
    return %c0_i32, %c0_i32_0 : i32, i32
  }
  func.func @transform_9(%arg0: i32) -> (i32, i32) {
    %c0_i32 = arith.constant 0 : i32
    %c0_i32_0 = arith.constant 0 : i32
    %c0_i32_1 = arith.constant 0 : i32
    return %c0_i32, %c0_i32_0 : i32, i32
  }
  func.func @transform_10(%arg0: i32) -> (i32, i32) {
    %c0_i32 = arith.constant 0 : i32
    %c0_i32_0 = arith.constant 0 : i32
    %c0_i32_1 = arith.constant 0 : i32
    return %c0_i32, %c0_i32_0 : i32, i32
  }
  func.func @transform_11(%arg0: i32) -> (i32, i32) {
    %c0_i32 = arith.constant 0 : i32
    %c0_i32_0 = arith.constant 0 : i32
    %c0_i32_1 = arith.constant 0 : i32
    return %c0_i32, %c0_i32_0 : i32, i32
  }
  func.func @transform_12(%arg0: i32) -> (i32, i32) {
    %c0_i32 = arith.constant 0 : i32
    %c0_i32_0 = arith.constant 0 : i32
    %c0_i32_1 = arith.constant 0 : i32
    return %c0_i32, %c0_i32_0 : i32, i32
  }
  func.func @transform_13(%arg0: i32) -> (i32, i32) {
    %c0_i32 = arith.constant 0 : i32
    %c0_i32_0 = arith.constant 0 : i32
    return %arg0, %c0_i32 : i32, i32
  }
}

</mosaic_0001>

<llo_original>
// kernel: tpu_custom_call.1
$region0: #{tpu_custom_call.1}
  #allocation0 [shape = 'u32[]', space=smem, size = 0x4, offset = 0x4, fixed_abs, tag = 'smem constant byte address 0x4 - core index']
  #allocation1 [shape = 'u32[144,128]{1,0:T(1,128)}', space=vmem, size = 0x12000, scoped, tag = 'internal scratch']
  %s0 = inlined_call_operand.vmem [shape: f32[16,16], index: 0, kind: input, shape index: {}]
  %s1 = inlined_call_operand.hbm [shape: f32[16,32], index: 1, kind: input, shape index: {}]
  %s2 = inlined_call_operand.vmem [shape: f32[1,32], index: 2, kind: input, shape index: {}]
  %s3 = inlined_call_operand.vmem [shape: f32[1,32], index: 3, kind: input, shape index: {}]
  %s4 = inlined_call_operand.vmem [shape: f32[1,32], index: 4, kind: input, shape index: {}]
  %s5 = inlined_call_operand.vmem [shape: f32[32,32], index: 5, kind: input, shape index: {}]
  %s6 = inlined_call_operand.vmem [shape: f32[1,32], index: 6, kind: input, shape index: {}]
  %s7 = inlined_call_operand.vmem [shape: f32[1,32], index: 7, kind: input, shape index: {}]
  %s8 = inlined_call_operand.vmem [shape: f32[1,32], index: 8, kind: input, shape index: {}]
  %s9 = inlined_call_operand.vmem [shape: f32[32,8], index: 9, kind: input, shape index: {}]
  %s10 = inlined_call_operand.vmem [shape: f32[1,8], index: 10, kind: input, shape index: {}]
  %s11 = inlined_call_operand.vmem [shape: f32[1,8], index: 11, kind: input, shape index: {}]
  %s12 = inlined_call_operand.vmem [shape: f32[1,8], index: 12, kind: input, shape index: {}]
  %s13 = inlined_call_operand.vmem [shape: f32[16,8], index: 13, kind: output, shape index: {}]
  %s14 = sld [smem:[#allocation0]]
  $region66: #{tpu_custom_call.1} parent=0
    _
  %s16 = ssub.s32 1, %s14
  %s17 = scalar_select 0, %s16, %s14
  $region1: #{tpu_custom_call.1} parent=0
    #allocation2 [shape = 'u8[8192]{0}', space=vmem, size = 0x2000, scoped, tag = 'input window, operand 1, single buffered']
    #allocation3 [shape = 's32[1]{0}', space=sflag, size = 0x4, scoped, tag = 'scoped memory for tpu_custom_call.1']
    %18 = vsyncpa [#allocation3], 0
    // Predicated region
    $region2: #{tpu_custom_call.1} parent=1 // pred_check
      _
    $region3: #{tpu_custom_call.1} parent=1 // pred_check_branch
      %20 = sbr.rel (0) target = $region5
    $region4: #{tpu_custom_call.1} parent=1 // pred_region
      _
    $region5: #{tpu_custom_call.1} parent=1 // pred_fallthru
      _
    // Predicated region
    $region6: #{tpu_custom_call.1} parent=1 // pred_check
      _
    $region7: #{tpu_custom_call.1} parent=1 // pred_check_branch
      %22 = sbr.rel (0) target = $region9
    $region8: #{tpu_custom_call.1} parent=1 // pred_region
      %s24 = ssub.s32 256, 256
      %25 = vsyncadd [#allocation3], %s24
      %s26 = sshll.u32 [#allocation2], 4
      %s27 = int_to_ptr.vmem [resolvable:$true] %s26
      %32 = dma.hbm_to_vmem [thread:$0]  %s1, 256, %s27, [#allocation3], 128, 128, 8
    $region9: #{tpu_custom_call.1} parent=1 // pred_fallthru
      _
    // Predicated region
    $region10: #{tpu_custom_call.1} parent=1 // pred_check
      _
    $region11: #{tpu_custom_call.1} parent=1 // pred_check_branch
      %34 = sbr.rel (0) target = $region13
    $region12: #{tpu_custom_call.1} parent=1 // pred_region
      _
    $region13: #{tpu_custom_call.1} parent=1 // pred_fallthru
      _
    // Predicated region
    $region14: #{tpu_custom_call.1} parent=1 // pred_check
      _
    $region15: #{tpu_custom_call.1} parent=1 // pred_check_branch
      %36 = sbr.rel (0) target = $region17
    $region16: #{tpu_custom_call.1} parent=1 // pred_region
      _
    $region17: #{tpu_custom_call.1} parent=1 // pred_fallthru
      _
    // Predicated region
    $region18: #{tpu_custom_call.1} parent=1 // pred_check
      _
    $region19: #{tpu_custom_call.1} parent=1 // pred_check_branch
      %38 = sbr.rel (0) target = $region21
    $region20: #{tpu_custom_call.1} parent=1 // pred_region
      _
    $region21: #{tpu_custom_call.1} parent=1 // pred_fallthru
      _
    // Predicated region
    $region22: #{tpu_custom_call.1} parent=1 // pred_check
      _
    $region23: #{tpu_custom_call.1} parent=1 // pred_check_branch
      %40 = sbr.rel (0) target = $region25
    $region24: #{tpu_custom_call.1} parent=1 // pred_region
      _
    $region25: #{tpu_custom_call.1} parent=1 // pred_fallthru
      _
    // Predicated region
    $region26: #{tpu_custom_call.1} parent=1 // pred_check
      _
    $region27: #{tpu_custom_call.1} parent=1 // pred_check_branch
      %42 = sbr.rel (0) target = $region29
    $region28: #{tpu_custom_call.1} parent=1 // pred_region
      _
    $region29: #{tpu_custom_call.1} parent=1 // pred_fallthru
      _
    // Predicated region
    $region30: #{tpu_custom_call.1} parent=1 // pred_check
      _
    $region31: #{tpu_custom_call.1} parent=1 // pred_check_branch
      %44 = sbr.rel (0) target = $region33
    $region32: #{tpu_custom_call.1} parent=1 // pred_region
      _
    $region33: #{tpu_custom_call.1} parent=1 // pred_fallthru
      _
    // Predicated region
    $region34: #{tpu_custom_call.1} parent=1 // pred_check
      _
    $region35: #{tpu_custom_call.1} parent=1 // pred_check_branch
      %46 = sbr.rel (0) target = $region37
    $region36: #{tpu_custom_call.1} parent=1 // pred_region
      _
    $region37: #{tpu_custom_call.1} parent=1 // pred_fallthru
      _
    // Predicated region
    $region38: #{tpu_custom_call.1} parent=1 // pred_check
      _
    $region39: #{tpu_custom_call.1} parent=1 // pred_check_branch
      %48 = sbr.rel (0) target = $region41
    $region40: #{tpu_custom_call.1} parent=1 // pred_region
      _
    $region41: #{tpu_custom_call.1} parent=1 // pred_fallthru
      _
    // Predicated region
    $region42: #{tpu_custom_call.1} parent=1 // pred_check
      _
    $region43: #{tpu_custom_call.1} parent=1 // pred_check_branch
      %50 = sbr.rel (0) target = $region45
    $region44: #{tpu_custom_call.1} parent=1 // pred_region
      _
    $region45: #{tpu_custom_call.1} parent=1 // pred_fallthru
      _
    // Predicated region
    $region46: #{tpu_custom_call.1} parent=1 // pred_check
      _
    $region47: #{tpu_custom_call.1} parent=1 // pred_check_branch
      %52 = sbr.rel (0) target = $region49
    $region48: #{tpu_custom_call.1} parent=1 // pred_region
      _
    $region49: #{tpu_custom_call.1} parent=1 // pred_fallthru
      _
    // Predicated region
    $region50: #{tpu_custom_call.1} parent=1 // pred_check
      _
    $region51: #{tpu_custom_call.1} parent=1 // pred_check_branch
      %54 = sbr.rel (0) target = $region53
    $region52: #{tpu_custom_call.1} parent=1 // pred_region
      _
    $region53: #{tpu_custom_call.1} parent=1 // pred_fallthru
      _
    // Predicated region
    $region54: #{tpu_custom_call.1} parent=1 // pred_check
      _
    $region55: #{tpu_custom_call.1} parent=1 // pred_check_branch
      %56 = sbr.rel (0) target = $region57
    $region56: #{tpu_custom_call.1} parent=1 // pred_region
      %57 = dma.done [#allocation3], 256
    $region57: #{tpu_custom_call.1} parent=1 // pred_fallthru
      _
    %v58 = vld [vmem:[%s0] sm:$0xff]
    %v59 = vld [vmem:[%s0 + $0x8] sm:$0xff]
    %v60 = vld [vmem:[#allocation2] sm:$0xff]
    %v61 = vld [vmem:[#allocation2 + $0x8] sm:$0xff]
    %v62 = vld [vmem:[%s2] sm:$0x1]
    %v64 = vlaneseq
    %v65 = vshrl.u32 %v64, 7
    %v66 = vsub.s32 0, %v65
    %v67 = vrot.slane %v62, %v66
    %vm69 = vcmask 130048
    %v71 = vsel %vm69, %v58, 0
    %v74 = vsel %vm69, %v59, 0
    %76 = vmatprep.subr.mxu0 0.0
    %77 = vmatpush1.msra.mxu0 %v60
    %78 = vmatprep.subr.mxu0 0.0
    %79 = vmatpush1.msra.mxu0 %v61
    %80 = vmatprep.subr.mxu0 0.0
    %81 = vmatpush1.msra.mxu0 0.0
    %82 = vmatprep.subr.mxu0 0.0
    %83 = vmatpush1.msra.mxu0 0.0
    %84 = vmatprep.subr.mxu0 0.0
    %85 = vmatpush1.msra.mxu0 0.0
    %86 = vmatprep.subr.mxu0 0.0
    %87 = vmatpush1.msra.mxu0 0.0
    %88 = vmatprep.subr.mxu0 0.0
    %89 = vmatpush1.msra.mxu0 0.0
    %90 = vmatprep.subr.mxu0 0.0
    %91 = vmatpush1.msra.mxu0 0.0
    %92 = vmatprep.subr.mxu0 0.0
    %93 = vmatpush1.msra.mxu0 0.0
    %94 = vmatprep.subr.mxu0 0.0
    %95 = vmatpush1.msra.mxu0 0.0
    %96 = vmatprep.subr.mxu0 0.0
    %97 = vmatpush1.msra.mxu0 0.0
    %98 = vmatprep.subr.mxu0 0.0
    %99 = vmatpush1.msra.mxu0 0.0
    %100 = vmatprep.subr.mxu0 0.0
    %101 = vmatpush1.msra.mxu0 0.0
    %102 = vmatprep.subr.mxu0 0.0
    %103 = vmatpush1.msra.mxu0 0.0
    %104 = vmatprep.subr.mxu0 0.0
    %105 = vmatpush1.msra.mxu0 0.0
    %106 = vmatprep.subr.mxu0 0.0
    %107 = vmatpush1.msra.mxu0 0.0
    %108 = vmatprep.subr.mxu0 0.0
    %109 = vmatpush1.msra.mxu0 0.0
    %110 = vmatprep.subr.mxu0 0.0
    %111 = vmatpush1.msra.mxu0 0.0
    %112 = vmatprep.subr.mxu0 0.0
    %113 = vmatpush1.msra.mxu0 0.0
    %114 = vmatprep.subr.mxu0 0.0
    %115 = vmatpush1.msra.mxu0 0.0
    %116 = vmatprep.subr.mxu0 0.0
    %117 = vmatpush1.msra.mxu0 0.0
    %118 = vmatprep.subr.mxu0 0.0
    %119 = vmatpush1.msra.mxu0 0.0
    %120 = vmatprep.subr.mxu0 0.0
    %121 = vmatpush1.msra.mxu0 0.0
    %122 = vmatprep.subr.mxu0 0.0
    %123 = vmatpush1.msra.mxu0 0.0
    %124 = vmatprep.subr.mxu0 0.0
    %125 = vmatpush1.msra.mxu0 0.0
    %126 = vmatprep.subr.mxu0 0.0
    %127 = vmatpush1.msra.mxu0 0.0
    %128 = vmatprep.subr.mxu0 0.0
    %129 = vmatpush1.msra.mxu0 0.0
    %130 = vmatprep.subr.mxu0 0.0
    %131 = vmatpush1.msra.mxu0 0.0
    %132 = vmatprep.subr.mxu0 0.0
    %133 = vmatpush1.msra.mxu0 0.0
    %134 = vmatprep.subr.mxu0 0.0
    %135 = vmatpush1.msra.mxu0 0.0
    %136 = vmatprep.subr.mxu0 0.0
    %137 = vmatpush1.msra.mxu0 0.0
    %138 = vmatprep.subr.mxu0 0.0
    %139 = vmatpush1.msra.mxu0 0.0
    %140 = vmatprep.mubr.f32.mxu0 0.0
    %141 = vmatmul.mubr.f32.gmra.mrb[0].mxu0 %v71
    %v142 = vpop.f32.mrb[0].mxu0
    %v143 = vadd.f32 %v67, %v142
    %v144 = vpop.f32.mrb[0].mxu0
    %145 = vmatprep.mubr.f32.mxu0 0.0
    %146 = vmatmul.mubr.f32.gmra.mrb[0].mxu0 %v74
    %v147 = vpop.f32.mrb[0].mxu0
    %v148 = vadd.f32 %v67, %v147
    %v149 = vpop.f32.mrb[0].mxu0
    %150 = vdwg.mxu0
    %vm151 = vcmask 261120
    %v152 = vsel %vm151, %v143, 0.0
    %153 = vadd.xlane.f32.xlu0 %v152
    %v154 = vpop.xlane.xlu0 %153
    %v155 = vsel %vm151, %v148, 0.0
    %156 = vadd.xlane.f32.xlu0 %v155
    %v157 = vpop.xlane.xlu0 %156
    %v158 = vrcp.pop 32.0
    %v159 = vmul.f32 %v154, %v158
    %v160 = vmul.f32 %v157, %v158
    %v161 = vsub.f32 %v143, %v159
    %v162 = vsub.f32 %v148, %v160
    %v163 = vmul.f32 %v161, %v161
    %v164 = vmul.f32 %v162, %v162
    %v165 = vsel %vm151, %v163, 0.0
    %166 = vadd.xlane.f32.xlu0 %v165
    %v167 = vpop.xlane.xlu0 %166
    %v168 = vsel %vm151, %v164, 0.0
    %169 = vadd.xlane.f32.xlu0 %v168
    %v170 = vpop.xlane.xlu0 %169
    %v171 = vmul.f32 %v167, %v158
    %v172 = vmul.f32 %v170, %v158
    %v173 = vadd.f32 %v171, 1e-05
    %v174 = vadd.f32 %v172, 1e-05
    %v175 = vrsqrt.pop %v173
    %v176 = vrsqrt.pop %v174
    %v177 = vmul.f32 %v161, %v175
    %v178 = vmul.f32 %v162, %v176
    %v179 = vld [vmem:[%s3] sm:$0x1]
    %v181 = vlaneseq
    %v182 = vshrl.u32 %v181, 7
    %v183 = vsub.s32 0, %v182
    %v184 = vrot.slane %v179, %v183
    %v186 = vmul.f32 %v177, %v184
    %v187 = vmul.f32 %v178, %v184
    %v188 = vld [vmem:[%s4] sm:$0x1]
    %v190 = vlaneseq
    %v191 = vshrl.u32 %v190, 7
    %v192 = vsub.s32 0, %v191
    %v193 = vrot.slane %v188, %v192
    %v195 = vadd.f32 %v186, %v193
    %v196 = vadd.f32 %v187, %v193
    %v197 = vmax.f32 %v195, 0.0
    %v198 = vmax.f32 %v196, 0.0
    %v199 = vld [vmem:[%s5] sm:$0xff]
    %v200 = vld [vmem:[%s5 + $0x8] sm:$0xff]
    %v201 = vld [vmem:[%s5 + $0x10] sm:$0xff]
    %v202 = vld [vmem:[%s5 + $0x18] sm:$0xff]
    %v203 = vld [vmem:[%s6] sm:$0x1]
    %v205 = vlaneseq
    %v206 = vshrl.u32 %v205, 7
    %v207 = vsub.s32 0, %v206
    %v208 = vrot.slane %v203, %v207
    %v211 = vsel %vm151, %v197, 0
    %v214 = vsel %vm151, %v198, 0
    %216 = vmatprep.subr.mxu0 0.0
    %217 = vmatpush1.msra.mxu0 %v199
    %218 = vmatprep.subr.mxu0 0.0
    %219 = vmatpush1.msra.mxu0 %v200
    %220 = vmatprep.subr.mxu0 0.0
    %221 = vmatpush1.msra.mxu0 %v201
    %222 = vmatprep.subr.mxu0 0.0
    %223 = vmatpush1.msra.mxu0 %v202
    %224 = vmatprep.subr.mxu0 0.0
    %225 = vmatpush1.msra.mxu0 0.0
    %226 = vmatprep.subr.mxu0 0.0
    %227 = vmatpush1.msra.mxu0 0.0
    %228 = vmatprep.subr.mxu0 0.0
    %229 = vmatpush1.msra.mxu0 0.0
    %230 = vmatprep.subr.mxu0 0.0
    %231 = vmatpush1.msra.mxu0 0.0
    %232 = vmatprep.subr.mxu0 0.0
    %233 = vmatpush1.msra.mxu0 0.0
    %234 = vmatprep.subr.mxu0 0.0
    %235 = vmatpush1.msra.mxu0 0.0
    %236 = vmatprep.subr.mxu0 0.0
    %237 = vmatpush1.msra.mxu0 0.0
    %238 = vmatprep.subr.mxu0 0.0
    %239 = vmatpush1.msra.mxu0 0.0
    %240 = vmatprep.subr.mxu0 0.0
    %241 = vmatpush1.msra.mxu0 0.0
    %242 = vmatprep.subr.mxu0 0.0
    %243 = vmatpush1.msra.mxu0 0.0
    %244 = vmatprep.subr.mxu0 0.0
    %245 = vmatpush1.msra.mxu0 0.0
    %246 = vmatprep.subr.mxu0 0.0
    %247 = vmatpush1.msra.mxu0 0.0
    %248 = vmatprep.subr.mxu0 0.0
    %249 = vmatpush1.msra.mxu0 0.0
    %250 = vmatprep.subr.mxu0 0.0
    %251 = vmatpush1.msra.mxu0 0.0
    %252 = vmatprep.subr.mxu0 0.0
    %253 = vmatpush1.msra.mxu0 0.0
    %254 = vmatprep.subr.mxu0 0.0
    %255 = vmatpush1.msra.mxu0 0.0
    %256 = vmatprep.subr.mxu0 0.0
    %257 = vmatpush1.msra.mxu0 0.0
    %258 = vmatprep.subr.mxu0 0.0
    %259 = vmatpush1.msra.mxu0 0.0
    %260 = vmatprep.subr.mxu0 0.0
    %261 = vmatpush1.msra.mxu0 0.0
    %262 = vmatprep.subr.mxu0 0.0
    %263 = vmatpush1.msra.mxu0 0.0
    %264 = vmatprep.subr.mxu0 0.0
    %265 = vmatpush1.msra.mxu0 0.0
    %266 = vmatprep.subr.mxu0 0.0
    %267 = vmatpush1.msra.mxu0 0.0
    %268 = vmatprep.subr.mxu0 0.0
    %269 = vmatpush1.msra.mxu0 0.0
    %270 = vmatprep.subr.mxu0 0.0
    %271 = vmatpush1.msra.mxu0 0.0
    %272 = vmatprep.subr.mxu0 0.0
    %273 = vmatpush1.msra.mxu0 0.0
    %274 = vmatprep.subr.mxu0 0.0
    %275 = vmatpush1.msra.mxu0 0.0
    %276 = vmatprep.subr.mxu0 0.0
    %277 = vmatpush1.msra.mxu0 0.0
    %278 = vmatprep.subr.mxu0 0.0
    %279 = vmatpush1.msra.mxu0 0.0
    %280 = vmatprep.mubr.f32.mxu0 0.0
    %281 = vmatmul.mubr.f32.gmra.mrb[0].mxu0 %v211
    %v282 = vpop.f32.mrb[0].mxu0
    %v283 = vadd.f32 %v208, %v282
    %v284 = vpop.f32.mrb[0].mxu0
    %285 = vmatprep.mubr.f32.mxu0 0.0
    %286 = vmatmul.mubr.f32.gmra.mrb[0].mxu0 %v214
    %v287 = vpop.f32.mrb[0].mxu0
    %v288 = vadd.f32 %v208, %v287
    %v289 = vpop.f32.mrb[0].mxu0
    %290 = vdwg.mxu0
    %v291 = vsel %vm151, %v283, 0.0
    %292 = vadd.xlane.f32.xlu0 %v291
    %v293 = vpop.xlane.xlu0 %292
    %v294 = vsel %vm151, %v288, 0.0
    %295 = vadd.xlane.f32.xlu0 %v294
    %v296 = vpop.xlane.xlu0 %295
    %v297 = vmul.f32 %v293, %v158
    %v298 = vmul.f32 %v296, %v158
    %v299 = vsub.f32 %v283, %v297
    %v300 = vsub.f32 %v288, %v298
    %v301 = vmul.f32 %v299, %v299
    %v302 = vmul.f32 %v300, %v300
    %v303 = vsel %vm151, %v301, 0.0
    %304 = vadd.xlane.f32.xlu0 %v303
    %v305 = vpop.xlane.xlu0 %304
    %v306 = vsel %vm151, %v302, 0.0
    %307 = vadd.xlane.f32.xlu0 %v306
    %v308 = vpop.xlane.xlu0 %307
    %v309 = vmul.f32 %v305, %v158
    %v310 = vmul.f32 %v308, %v158
    %v311 = vadd.f32 %v309, 1e-05
    %v312 = vadd.f32 %v310, 1e-05
    %v313 = vrsqrt.pop %v311
    %v314 = vrsqrt.pop %v312
    %v315 = vmul.f32 %v299, %v313
    %v316 = vmul.f32 %v300, %v314
    %v317 = vld [vmem:[%s7] sm:$0x1]
    %v319 = vlaneseq
    %v320 = vshrl.u32 %v319, 7
    %v321 = vsub.s32 0, %v320
    %v322 = vrot.slane %v317, %v321
    %v324 = vmul.f32 %v315, %v322
    %v325 = vmul.f32 %v316, %v322
    %v326 = vld [vmem:[%s8] sm:$0x1]
    %v328 = vlaneseq
    %v329 = vshrl.u32 %v328, 7
    %v330 = vsub.s32 0, %v329
    %v331 = vrot.slane %v326, %v330
    %v333 = vadd.f32 %v324, %v331
    %v334 = vadd.f32 %v325, %v331
    %v335 = vmax.f32 %v333, 0.0
    %v336 = vmax.f32 %v334, 0.0
    %v337 = vld [vmem:[%s9] sm:$0xff]
    %v338 = vld [vmem:[%s9 + $0x8] sm:$0xff]
    %v339 = vld [vmem:[%s9 + $0x10] sm:$0xff]
    %v340 = vld [vmem:[%s9 + $0x18] sm:$0xff]
    %v341 = vld [vmem:[%s10] sm:$0x1]
    %v343 = vlaneseq
    %v344 = vshrl.u32 %v343, 7
    %v345 = vsub.s32 0, %v344
    %v346 = vrot.slane %v341, %v345
    %v349 = vsel %vm151, %v335, 0
    %v352 = vsel %vm151, %v336, 0
    %354 = vmatprep.subr.mxu0 0.0
    %355 = vmatpush1.msra.mxu0 %v337
    %356 = vmatprep.subr.mxu0 0.0
    %357 = vmatpush1.msra.mxu0 %v338
    %358 = vmatprep.subr.mxu0 0.0
    %359 = vmatpush1.msra.mxu0 %v339
    %360 = vmatprep.subr.mxu0 0.0
    %361 = vmatpush1.msra.mxu0 %v340
    %362 = vmatprep.subr.mxu0 0.0
    %363 = vmatpush1.msra.mxu0 0.0
    %364 = vmatprep.subr.mxu0 0.0
    %365 = vmatpush1.msra.mxu0 0.0
    %366 = vmatprep.subr.mxu0 0.0
    %367 = vmatpush1.msra.mxu0 0.0
    %368 = vmatprep.subr.mxu0 0.0
    %369 = vmatpush1.msra.mxu0 0.0
    %370 = vmatprep.subr.mxu0 0.0
    %371 = vmatpush1.msra.mxu0 0.0
    %372 = vmatprep.subr.mxu0 0.0
    %373 = vmatpush1.msra.mxu0 0.0
    %374 = vmatprep.subr.mxu0 0.0
    %375 = vmatpush1.msra.mxu0 0.0
    %376 = vmatprep.subr.mxu0 0.0
    %377 = vmatpush1.msra.mxu0 0.0
    %378 = vmatprep.subr.mxu0 0.0
    %379 = vmatpush1.msra.mxu0 0.0
    %380 = vmatprep.subr.mxu0 0.0
    %381 = vmatpush1.msra.mxu0 0.0
    %382 = vmatprep.subr.mxu0 0.0
    %383 = vmatpush1.msra.mxu0 0.0
    %384 = vmatprep.subr.mxu0 0.0
    %385 = vmatpush1.msra.mxu0 0.0
    %386 = vmatprep.subr.mxu0 0.0
    %387 = vmatpush1.msra.mxu0 0.0
    %388 = vmatprep.subr.mxu0 0.0
    %389 = vmatpush1.msra.mxu0 0.0
    %390 = vmatprep.subr.mxu0 0.0
    %391 = vmatpush1.msra.mxu0 0.0
    %392 = vmatprep.subr.mxu0 0.0
    %393 = vmatpush1.msra.mxu0 0.0
    %394 = vmatprep.subr.mxu0 0.0
    %395 = vmatpush1.msra.mxu0 0.0
    %396 = vmatprep.subr.mxu0 0.0
    %397 = vmatpush1.msra.mxu0 0.0
    %398 = vmatprep.subr.mxu0 0.0
    %399 = vmatpush1.msra.mxu0 0.0
    %400 = vmatprep.subr.mxu0 0.0
    %401 = vmatpush1.msra.mxu0 0.0
    %402 = vmatprep.subr.mxu0 0.0
    %403 = vmatpush1.msra.mxu0 0.0
    %404 = vmatprep.subr.mxu0 0.0
    %405 = vmatpush1.msra.mxu0 0.0
    %406 = vmatprep.subr.mxu0 0.0
    %407 = vmatpush1.msra.mxu0 0.0
    %408 = vmatprep.subr.mxu0 0.0
    %409 = vmatpush1.msra.mxu0 0.0
    %410 = vmatprep.subr.mxu0 0.0
    %411 = vmatpush1.msra.mxu0 0.0
    %412 = vmatprep.subr.mxu0 0.0
    %413 = vmatpush1.msra.mxu0 0.0
    %414 = vmatprep.subr.mxu0 0.0
    %415 = vmatpush1.msra.mxu0 0.0
    %416 = vmatprep.subr.mxu0 0.0
    %417 = vmatpush1.msra.mxu0 0.0
    %418 = vmatprep.mubr.f32.mxu0 0.0
    %419 = vmatmul.mubr.f32.gmra.mrb[0].mxu0 %v349
    %v420 = vpop.f32.mrb[0].mxu0
    %v421 = vadd.f32 %v346, %v420
    %v422 = vpop.f32.mrb[0].mxu0
    %423 = vmatprep.mubr.f32.mxu0 0.0
    %424 = vmatmul.mubr.f32.gmra.mrb[0].mxu0 %v352
    %v425 = vpop.f32.mrb[0].mxu0
    %v426 = vadd.f32 %v346, %v425
    %v427 = vpop.f32.mrb[0].mxu0
    %428 = vdwg.mxu0
    %vm429 = vcmask 64512
    %v430 = vsel %vm429, %v421, 0.0
    %431 = vadd.xlane.f32.xlu0 %v430
    %v432 = vpop.xlane.xlu0 %431
    %v433 = vsel %vm429, %v426, 0.0
    %434 = vadd.xlane.f32.xlu0 %v433
    %v435 = vpop.xlane.xlu0 %434
    %v436 = vrcp.pop 8.0
    %v437 = vmul.f32 %v432, %v436
    %v438 = vmul.f32 %v435, %v436
    %v439 = vsub.f32 %v421, %v437
    %v440 = vsub.f32 %v426, %v438
    %v441 = vmul.f32 %v439, %v439
    %v442 = vmul.f32 %v440, %v440
    %v443 = vsel %vm429, %v441, 0.0
    %444 = vadd.xlane.f32.xlu0 %v443
    %v445 = vpop.xlane.xlu0 %444
    %v446 = vsel %vm429, %v442, 0.0
    %447 = vadd.xlane.f32.xlu0 %v446
    %v448 = vpop.xlane.xlu0 %447
    %v449 = vmul.f32 %v445, %v436
    %v450 = vmul.f32 %v448, %v436
    %v451 = vadd.f32 %v449, 1e-05
    %v452 = vadd.f32 %v450, 1e-05
    %v453 = vrsqrt.pop %v451
    %v454 = vrsqrt.pop %v452
    %v455 = vmul.f32 %v439, %v453
    %v456 = vmul.f32 %v440, %v454
    %v457 = vld [vmem:[%s11] sm:$0x1]
    %v459 = vlaneseq
    %v460 = vshrl.u32 %v459, 7
    %v461 = vsub.s32 0, %v460
    %v462 = vrot.slane %v457, %v461
    %v464 = vmul.f32 %v455, %v462
    %v465 = vmul.f32 %v456, %v462
    %v466 = vld [vmem:[%s12] sm:$0x1]
    %v468 = vlaneseq
    %v469 = vshrl.u32 %v468, 7
    %v470 = vsub.s32 0, %v469
    %v471 = vrot.slane %v466, %v470
    %v473 = vadd.f32 %v464, %v471
    %v474 = vadd.f32 %v465, %v471
    %475 = vst.msk [vmem:[%s13] sm:$0xff] %vm429, %v473
    %476 = vst.msk [vmem:[%s13 + $0x8] sm:$0xff] %vm429, %v474
    // Predicated region
    $region58: #{tpu_custom_call.1} parent=1 // pred_check
      _
    $region59: #{tpu_custom_call.1} parent=1 // pred_check_branch
      %478 = sbr.rel (0) target = $region61
    $region60: #{tpu_custom_call.1} parent=1 // pred_region
      _
    $region61: #{tpu_custom_call.1} parent=1 // pred_fallthru
      _
    // Predicated region
    $region62: #{tpu_custom_call.1} parent=1 // pred_check
      _
    $region63: #{tpu_custom_call.1} parent=1 // pred_check_branch
      %480 = sbr.rel (0) target = $region65
    $region64: #{tpu_custom_call.1} parent=1 // pred_region
      _
    $region65: #{tpu_custom_call.1} parent=1 // pred_fallthru
      _
    %481 = vsyncpa [#allocation3], 1

</llo_original>
